<compile_context>
chip_gen: v7x
topology: tpu7x:2x2x1
jax: 0.10.0
libtpu: 0.0.40
codegen_flags: <defaults>
</compile_context>

<pallas_src>
import jax
import jax.numpy as jnp
from jax.experimental import pallas as pl
from jax.experimental.pallas import tpu as pltpu

_LANE = 128
_NEG_INF = -1e30  # finite "-inf": pad class lanes never win the max nor add to logsumexp


def _round_up(x, m):
    return ((x + m - 1) // m) * m


def _make_mlp_kernel(nb_layers):
    """Fused nb_layers-deep MLP + log_softmax; all operands resident in VMEM."""

    def kernel(*refs):
        # refs = (x_ref, w0, b0, w1, b1, ..., w_{L-1}, b_{L-1}, o_ref)
        x_ref, o_ref = refs[0], refs[-1]
        wb = refs[1:-1]

        h = x_ref[...]                                  # bf16 (tile_b, p_in)
        logits = None
        for i in range(nb_layers):
            w = wb[2 * i][...]                          # bf16 (p_in, p_out)
            b = wb[2 * i + 1][...]                      # f32  (1, p_out)
            y = jnp.dot(h, w, preferred_element_type=jnp.float32) + b
            if i < nb_layers - 1:
                # ReLU in f32; cast back to bf16 only for the next MXU push.
                h = jnp.maximum(y, 0.0).astype(w.dtype)
            else:
                logits = y

        # Numerically stable log_softmax over the lane-dense class dim.
        m = jnp.max(logits, axis=-1, keepdims=True)
        shifted = logits - m
        lse = jnp.log(jnp.sum(jnp.exp(shifted), axis=-1, keepdims=True))
        o_ref[...] = (shifted - lse).astype(o_ref.dtype)

    return kernel


def classifier_forward(x, params, *, tile_b=256, compute_dtype=jnp.bfloat16):
    """params = [(W0, b0), ..., (W_{L-1}, b_{L-1})] with W_i of shape (in, out)."""
    # TODO(synk): dropout is identity at inference; training would need
    # pltpu.prng_seed / prng_random_bits masking inside the kernel.
    nb_layers = len(params)
    batch, input_size = x.shape
    nb_classes = params[-1][0].shape[1]

    # ---- pad every feature / class dim up to a lane multiple (128) ----
    dims = [input_size] + [w.shape[1] for (w, _) in params]
    pdims = [_round_up(d, _LANE) for d in dims]

    padded_params = []
    for i, (w, b) in enumerate(params):
        pw = (jnp.zeros((pdims[i], pdims[i + 1]), jnp.float32)
              .at[: w.shape[0], : w.shape[1]].set(w))
        bias_fill = _NEG_INF if i == nb_layers - 1 else 0.0
        pb = (jnp.full((1, pdims[i + 1]), bias_fill, jnp.float32)
              .at[0, : b.shape[0]].set(b))
        padded_params.append((pw.astype(compute_dtype), pb))

    # ---- pad / tile the batch ----
    tile_b = max(8, min(tile_b, _round_up(batch, 8)))
    padded_batch = _round_up(batch, tile_b)
    xp = (jnp.zeros((padded_batch, pdims[0]), jnp.float32)
          .at[:batch, :input_size].set(x)).astype(compute_dtype)
    n_tiles = padded_batch // tile_b

    in_specs = [pl.BlockSpec((tile_b, pdims[0]), lambda i: (i, 0))]
    flat_args = [xp]
    for (pw, pb) in padded_params:
        # Weights/biases: full-array blocks, index_map -> (0,0) so they stay resident.
        in_specs.append(pl.BlockSpec(pw.shape, lambda i: (0, 0)))
        in_specs.append(pl.BlockSpec(pb.shape, lambda i: (0, 0)))
        flat_args += [pw, pb]

    out = pl.pallas_call(
        _make_mlp_kernel(nb_layers),
        out_shape=jax.ShapeDtypeStruct((padded_batch, pdims[-1]), jnp.float32),
        grid=(n_tiles,),
        in_specs=in_specs,
        out_specs=pl.BlockSpec((tile_b, pdims[-1]), lambda i: (i, 0)),
        compiler_params=pltpu.CompilerParams(dimension_semantics=("parallel",)),
    )(*flat_args)

    return out[:batch, :nb_classes]


def init_classifier_params(key, nb_classes, input_size, nb_layers=3, hidden_dimension=64):
    """Deterministic PyTorch-style init: U(-1/sqrt(fan_in), 1/sqrt(fan_in))."""
    n = max(nb_layers, 1)
    dims = []
    for i in range(n):
        d_in = input_size if i == 0 else hidden_dimension
        d_out = nb_classes if i == n - 1 else hidden_dimension
        dims.append((d_in, d_out))

    params = []
    for (d_in, d_out) in dims:
        key, kw, kb = jax.random.split(key, 3)
        bound = 1.0 / (d_in ** 0.5)
        w = jax.random.uniform(kw, (d_in, d_out), jnp.float32, -bound, bound)
        b = jax.random.uniform(kb, (d_out,), jnp.float32, -bound, bound)
        params.append((w, b))
    return params


def reference_forward(x, params, compute_dtype=jnp.float32):
    """Plain-JAX reference. With compute_dtype=bf16 it mirrors the kernel's
    bf16-operand / f32-accumulate math exactly."""
    h = x.astype(compute_dtype)
    for (w, b) in params[:-1]:
        y = jnp.dot(h, w.astype(compute_dtype), preferred_element_type=jnp.float32) + b
        h = jnp.maximum(y, 0.0).astype(compute_dtype)
    w, b = params[-1]
    logits = jnp.dot(h, w.astype(compute_dtype), preferred_element_type=jnp.float32) + b
    return jax.nn.log_softmax(logits, axis=1)


if __name__ == "__main__":
    key = jax.random.PRNGKey(0)
    kx, kp = jax.random.split(key)

    batch = 64
    input_size = 32
    hidden_dimension = 64
    nb_classes = 10
    nb_layers = 3

    x = jax.random.normal(kx, (batch, input_size), jnp.float32)
    params = init_classifier_params(kp, nb_classes, input_size,
                                    nb_layers=nb_layers,
                                    hidden_dimension=hidden_dimension)

    out = classifier_forward(x, params)
    out = jax.block_until_ready(out)
    assert out.shape == (batch, nb_classes)

    # Tight check against a reference using the same bf16-operand math.
    ref_bf16 = reference_forward(x, params, compute_dtype=jnp.bfloat16)
    assert jnp.allclose(out, ref_bf16, atol=1e-4, rtol=1e-4), "mismatch vs bf16 reference"

    # Loose sanity check against the full-f32 module semantics.
    ref_f32 = reference_forward(x, params, compute_dtype=jnp.float32)
    assert jnp.allclose(out, ref_f32, atol=5e-2, rtol=5e-2), "mismatch vs f32 reference"

    print("KERNEL_OK")
</pallas_src>

<mosaic_0001>
module attributes {stable_mosaic.version = 11 : i64} {
  func.func @kernel(%arg0: i32, %arg1: memref<64x128xbf16, #tpu.memory_space<vmem>>, %arg2: memref<128x128xbf16, #tpu.memory_space<vmem>>, %arg3: memref<1x128xf32, #tpu.memory_space<vmem>>, %arg4: memref<128x128xbf16, #tpu.memory_space<vmem>>, %arg5: memref<1x128xf32, #tpu.memory_space<vmem>>, %arg6: memref<128x128xbf16, #tpu.memory_space<vmem>>, %arg7: memref<1x128xf32, #tpu.memory_space<vmem>>, %arg8: memref<64x128xf32, #tpu.memory_space<vmem>>) attributes {dimension_semantics = [#tpu.dimension_semantics<parallel>], iteration_bounds = array<i64: 1>, scalar_prefetch = 0 : i64, scratch_operands = 0 : i64, tpu.core_type = #tpu.core_type<tc>, window_params = [{transform_indices = @transform_0, window_bounds = array<i64: 64, 128>}, {pipeline_mode = #tpu.pipeline_mode<synchronous>, transform_indices = @transform_1, window_bounds = array<i64: 128, 128>}, {pipeline_mode = #tpu.pipeline_mode<synchronous>, transform_indices = @transform_2, window_bounds = array<i64: 1, 128>}, {pipeline_mode = #tpu.pipeline_mode<synchronous>, transform_indices = @transform_3, window_bounds = array<i64: 128, 128>}, {pipeline_mode = #tpu.pipeline_mode<synchronous>, transform_indices = @transform_4, window_bounds = array<i64: 1, 128>}, {pipeline_mode = #tpu.pipeline_mode<synchronous>, transform_indices = @transform_5, window_bounds = array<i64: 128, 128>}, {pipeline_mode = #tpu.pipeline_mode<synchronous>, transform_indices = @transform_6, window_bounds = array<i64: 1, 128>}, {transform_indices = @transform_7, window_bounds = array<i64: 64, 128>}]} {
    %c0 = arith.constant 0 : index
    %c0_0 = arith.constant 0 : index
    %0 = vector.load %arg1[%c0, %c0_0] : memref<64x128xbf16, #tpu.memory_space<vmem>>, vector<64x128xbf16>
    %c0_1 = arith.constant 0 : index
    %c0_2 = arith.constant 0 : index
    %1 = vector.load %arg2[%c0_1, %c0_2] : memref<128x128xbf16, #tpu.memory_space<vmem>>, vector<128x128xbf16>
    %c0_3 = arith.constant 0 : index
    %c0_4 = arith.constant 0 : index
    %2 = vector.load %arg3[%c0_3, %c0_4] : memref<1x128xf32, #tpu.memory_space<vmem>>, vector<1x128xf32>
    %cst = arith.constant dense<0.000000e+00> : vector<64x128xf32>
    %3 = tpu.matmul %0, %1, %cst {dimension_numbers = #tpu.dot_dimension_numbers<[1], [0], [0], [1], [0, 0, 1, 1], [], []>} : vector<64x128xbf16>, vector<128x128xbf16>, vector<64x128xf32> -> vector<64x128xf32>
    %4 = vector.broadcast %2 : vector<1x128xf32> to vector<64x128xf32>
    %5 = arith.addf %3, %4 : vector<64x128xf32>
    %cst_5 = arith.constant 0.000000e+00 : f32
    %6 = vector.broadcast %cst_5 : f32 to vector<64x128xf32>
    %7 = arith.maximumf %5, %6 : vector<64x128xf32>
    %8 = arith.truncf %7 : vector<64x128xf32> to vector<64x128xbf16>
    %c0_6 = arith.constant 0 : index
    %c0_7 = arith.constant 0 : index
    %9 = vector.load %arg4[%c0_6, %c0_7] : memref<128x128xbf16, #tpu.memory_space<vmem>>, vector<128x128xbf16>
    %c0_8 = arith.constant 0 : index
    %c0_9 = arith.constant 0 : index
    %10 = vector.load %arg5[%c0_8, %c0_9] : memref<1x128xf32, #tpu.memory_space<vmem>>, vector<1x128xf32>
    %cst_10 = arith.constant dense<0.000000e+00> : vector<64x128xf32>
    %11 = tpu.matmul %8, %9, %cst_10 {dimension_numbers = #tpu.dot_dimension_numbers<[1], [0], [0], [1], [0, 0, 1, 1], [], []>} : vector<64x128xbf16>, vector<128x128xbf16>, vector<64x128xf32> -> vector<64x128xf32>
    %12 = vector.broadcast %10 : vector<1x128xf32> to vector<64x128xf32>
    %13 = arith.addf %11, %12 : vector<64x128xf32>
    %cst_11 = arith.constant 0.000000e+00 : f32
    %14 = vector.broadcast %cst_11 : f32 to vector<64x128xf32>
    %15 = arith.maximumf %13, %14 : vector<64x128xf32>
    %16 = arith.truncf %15 : vector<64x128xf32> to vector<64x128xbf16>
    %c0_12 = arith.constant 0 : index
    %c0_13 = arith.constant 0 : index
    %17 = vector.load %arg6[%c0_12, %c0_13] : memref<128x128xbf16, #tpu.memory_space<vmem>>, vector<128x128xbf16>
    %c0_14 = arith.constant 0 : index
    %c0_15 = arith.constant 0 : index
    %18 = vector.load %arg7[%c0_14, %c0_15] : memref<1x128xf32, #tpu.memory_space<vmem>>, vector<1x128xf32>
    %cst_16 = arith.constant dense<0.000000e+00> : vector<64x128xf32>
    %19 = tpu.matmul %16, %17, %cst_16 {dimension_numbers = #tpu.dot_dimension_numbers<[1], [0], [0], [1], [0, 0, 1, 1], [], []>} : vector<64x128xbf16>, vector<128x128xbf16>, vector<64x128xf32> -> vector<64x128xf32>
    %20 = vector.broadcast %18 : vector<1x128xf32> to vector<64x128xf32>
    %21 = arith.addf %19, %20 : vector<64x128xf32>
    %cst_17 = arith.constant dense<0xFF800000> : vector<64xf32>
    %22 = vector.multi_reduction <maximumf>, %21, %cst_17 [1] : vector<64x128xf32> to vector<64xf32>
    %23 = vector.shape_cast %22 : vector<64xf32> to vector<64x1xf32>
    %24 = vector.broadcast %23 : vector<64x1xf32> to vector<64x128xf32>
    %25 = arith.subf %21, %24 : vector<64x128xf32>
    %26 = math.exp %25 : vector<64x128xf32>
    %cst_18 = arith.constant dense<0.000000e+00> : vector<64xf32>
    %27 = vector.multi_reduction <add>, %26, %cst_18 [1] : vector<64x128xf32> to vector<64xf32>
    %28 = vector.shape_cast %27 : vector<64xf32> to vector<64x1xf32>
    %29 = math.log %28 : vector<64x1xf32>
    %30 = vector.broadcast %29 : vector<64x1xf32> to vector<64x128xf32>
    %31 = arith.subf %25, %30 : vector<64x128xf32>
    %c0_19 = arith.constant 0 : index
    %c0_20 = arith.constant 0 : index
    %32 = vector.load %arg8[%c0_19, %c0_20] : memref<64x128xf32, #tpu.memory_space<vmem>>, vector<64x128xf32>
    tpu.vector_store %arg8[%c0_19, %c0_20], %31 {strides = array<i32>} : memref<64x128xf32, #tpu.memory_space<vmem>>, vector<64x128xf32>,
    return
  }
  func.func @transform_0(%arg0: i32) -> (i32, i32) {
    %c0_i32 = arith.constant 0 : i32
    %c0_i32_0 = arith.constant 0 : i32
    return %arg0, %c0_i32 : i32, i32
  }
  func.func @transform_1(%arg0: i32) -> (i32, i32) {
    %c0_i32 = arith.constant 0 : i32
    %c0_i32_0 = arith.constant 0 : i32
    %c0_i32_1 = arith.constant 0 : i32
    return %c0_i32, %c0_i32_0 : i32, i32
  }
  func.func @transform_2(%arg0: i32) -> (i32, i32) {
    %c0_i32 = arith.constant 0 : i32
    %c0_i32_0 = arith.constant 0 : i32
    %c0_i32_1 = arith.constant 0 : i32
    return %c0_i32, %c0_i32_0 : i32, i32
  }
  func.func @transform_3(%arg0: i32) -> (i32, i32) {
    %c0_i32 = arith.constant 0 : i32
    %c0_i32_0 = arith.constant 0 : i32
    %c0_i32_1 = arith.constant 0 : i32
    return %c0_i32, %c0_i32_0 : i32, i32
  }
  func.func @transform_4(%arg0: i32) -> (i32, i32) {
    %c0_i32 = arith.constant 0 : i32
    %c0_i32_0 = arith.constant 0 : i32
    %c0_i32_1 = arith.constant 0 : i32
    return %c0_i32, %c0_i32_0 : i32, i32
  }
  func.func @transform_5(%arg0: i32) -> (i32, i32) {
    %c0_i32 = arith.constant 0 : i32
    %c0_i32_0 = arith.constant 0 : i32
    %c0_i32_1 = arith.constant 0 : i32
    return %c0_i32, %c0_i32_0 : i32, i32
  }
  func.func @transform_6(%arg0: i32) -> (i32, i32) {
    %c0_i32 = arith.constant 0 : i32
    %c0_i32_0 = arith.constant 0 : i32
    %c0_i32_1 = arith.constant 0 : i32
    return %c0_i32, %c0_i32_0 : i32, i32
  }
  func.func @transform_7(%arg0: i32) -> (i32, i32) {
    %c0_i32 = arith.constant 0 : i32
    %c0_i32_0 = arith.constant 0 : i32
    return %arg0, %c0_i32 : i32, i32
  }
}

</mosaic_0001>

<llo_original>
// kernel: tpu_custom_call.1
$region0: #{tpu_custom_call.1}
  #allocation0 [shape = 'u32[]', space=smem, size = 0x4, offset = 0x4, fixed_abs, tag = 'smem constant byte address 0x4 - core index']
  #allocation1 [shape = 'u32[144,128]{1,0:T(1,128)}', space=vmem, size = 0x12000, scoped, tag = 'internal scratch']
  %s0 = inlined_call_operand.hbm [shape: bf16[64,128], index: 0, kind: input, shape index: {}]
  %s1 = inlined_call_operand.hbm [shape: bf16[128,128], index: 1, kind: input, shape index: {}]
  %s2 = inlined_call_operand.vmem [shape: f32[1,128], index: 2, kind: input, shape index: {}]
  %s3 = inlined_call_operand.hbm [shape: bf16[128,128], index: 3, kind: input, shape index: {}]
  %s4 = inlined_call_operand.vmem [shape: f32[1,128], index: 4, kind: input, shape index: {}]
  %s5 = inlined_call_operand.hbm [shape: bf16[128,128], index: 5, kind: input, shape index: {}]
  %s6 = inlined_call_operand.vmem [shape: f32[1,128], index: 6, kind: input, shape index: {}]
  %s7 = inlined_call_operand.hbm [shape: f32[64,128], index: 7, kind: output, shape index: {}]
  %s8 = sld [smem:[#allocation0]]
  $region54: #{tpu_custom_call.1} parent=0
    _
  %s10 = ssub.s32 1, %s8
  %s11 = scalar_select 0, %s10, %s8
  $region1: #{tpu_custom_call.1} parent=0
    #allocation2 [shape = 'u8[16384]{0}', space=vmem, size = 0x4000, scoped, tag = 'input window, operand 0, single buffered']
    #allocation3 [shape = 's32[1]{0}', space=sflag, size = 0x4, scoped, tag = 'scoped memory for tpu_custom_call.1']
    #allocation4 [shape = 's32[1]{0}', space=sflag, size = 0x4, scoped, tag = 'scoped memory for tpu_custom_call.1']
    #allocation5 [shape = 'u8[32768]{0}', space=vmem, size = 0x8000, scoped, tag = 'input window, operand 1, single buffered']
    #allocation6 [shape = 's32[1]{0}', space=sflag, size = 0x4, scoped, tag = 'scoped memory for tpu_custom_call.1']
    #allocation7 [shape = 'u8[32768]{0}', space=vmem, size = 0x8000, scoped, tag = 'input window, operand 3, single buffered']
    #allocation8 [shape = 'u8[32768]{0}', space=vmem, size = 0x8000, scoped, tag = 'input window, operand 5, single buffered']
    #allocation9 [shape = 's32[1]{0}', space=sflag, size = 0x4, scoped, tag = 'scoped memory for tpu_custom_call.1']
    #allocation10 [shape = 'u8[32768]{0}', space=vmem, size = 0x8000, scoped, tag = 'output window, operand 0, single buffered']
    %12 = vsyncpa [#allocation3], 0
    %13 = vsyncpa [#allocation6], 0
    %14 = vsyncpa [#allocation9], 0
    %15 = vsyncpa [#allocation4], 0
    // Predicated region
    $region2: #{tpu_custom_call.1} parent=1 // pred_check
      _
    $region3: #{tpu_custom_call.1} parent=1 // pred_check_branch
      %17 = sbr.rel (0) target = $region5
    $region4: #{tpu_custom_call.1} parent=1 // pred_region
      %s19 = ssub.s32 512, 512
      %20 = vsyncadd [#allocation3], %s19
      %s21 = sshll.u32 [#allocation2], 4
      %s22 = int_to_ptr.vmem [resolvable:$true] %s21
      %27 = dma.hbm_to_vmem [thread:$0]  %s0, 512, %s22, [#allocation3], 64, 64, 4
    $region5: #{tpu_custom_call.1} parent=1 // pred_fallthru
      _
    // Predicated region
    $region6: #{tpu_custom_call.1} parent=1 // pred_check
      _
    $region7: #{tpu_custom_call.1} parent=1 // pred_check_branch
      %29 = sbr.rel (0) target = $region9
    $region8: #{tpu_custom_call.1} parent=1 // pred_region
      %s31 = ssub.s32 1024, 1024
      %32 = vsyncadd [#allocation6], %s31
      %s33 = sshll.u32 [#allocation5], 4
      %s34 = int_to_ptr.vmem [resolvable:$true] %s33
      %39 = dma.hbm_to_vmem [thread:$0]  %s1, 1024, %s34, [#allocation6], 64, 64, 4
    $region9: #{tpu_custom_call.1} parent=1 // pred_fallthru
      _
    // Predicated region
    $region10: #{tpu_custom_call.1} parent=1 // pred_check
      _
    $region11: #{tpu_custom_call.1} parent=1 // pred_check_branch
      %41 = sbr.rel (0) target = $region13
    $region12: #{tpu_custom_call.1} parent=1 // pred_region
      _
    $region13: #{tpu_custom_call.1} parent=1 // pred_fallthru
      _
    // Predicated region
    $region14: #{tpu_custom_call.1} parent=1 // pred_check
      _
    $region15: #{tpu_custom_call.1} parent=1 // pred_check_branch
      %43 = sbr.rel (0) target = $region17
    $region16: #{tpu_custom_call.1} parent=1 // pred_region
      %s45 = ssub.s32 1024, 1024
      %46 = vsyncadd [#allocation6], %s45
      %s47 = sshll.u32 [#allocation7], 4
      %s48 = int_to_ptr.vmem [resolvable:$true] %s47
      %53 = dma.hbm_to_vmem [thread:$0]  %s3, 1024, %s48, [#allocation6], 64, 64, 4
    $region17: #{tpu_custom_call.1} parent=1 // pred_fallthru
      _
    // Predicated region
    $region18: #{tpu_custom_call.1} parent=1 // pred_check
      _
    $region19: #{tpu_custom_call.1} parent=1 // pred_check_branch
      %55 = sbr.rel (0) target = $region21
    $region20: #{tpu_custom_call.1} parent=1 // pred_region
      _
    $region21: #{tpu_custom_call.1} parent=1 // pred_fallthru
      _
    // Predicated region
    $region22: #{tpu_custom_call.1} parent=1 // pred_check
      _
    $region23: #{tpu_custom_call.1} parent=1 // pred_check_branch
      %57 = sbr.rel (0) target = $region25
    $region24: #{tpu_custom_call.1} parent=1 // pred_region
      %s59 = ssub.s32 1024, 1024
      %60 = vsyncadd [#allocation9], %s59
      %s61 = sshll.u32 [#allocation8], 4
      %s62 = int_to_ptr.vmem [resolvable:$true] %s61
      %67 = dma.hbm_to_vmem [thread:$0]  %s5, 1024, %s62, [#allocation9], 64, 64, 4
    $region25: #{tpu_custom_call.1} parent=1 // pred_fallthru
      _
    // Predicated region
    $region26: #{tpu_custom_call.1} parent=1 // pred_check
      _
    $region27: #{tpu_custom_call.1} parent=1 // pred_check_branch
      %69 = sbr.rel (0) target = $region29
    $region28: #{tpu_custom_call.1} parent=1 // pred_region
      _
    $region29: #{tpu_custom_call.1} parent=1 // pred_fallthru
      _
    // Predicated region
    $region30: #{tpu_custom_call.1} parent=1 // pred_check
      _
    $region31: #{tpu_custom_call.1} parent=1 // pred_check_branch
      %71 = sbr.rel (0) target = $region33
    $region32: #{tpu_custom_call.1} parent=1 // pred_region
      %72 = dma.done [#allocation3], 512
    $region33: #{tpu_custom_call.1} parent=1 // pred_fallthru
      _
    // Predicated region
    $region34: #{tpu_custom_call.1} parent=1 // pred_check
      _
    $region35: #{tpu_custom_call.1} parent=1 // pred_check_branch
      %74 = sbr.rel (0) target = $region37
    $region36: #{tpu_custom_call.1} parent=1 // pred_region
      %75 = dma.done [#allocation6], 1024
    $region37: #{tpu_custom_call.1} parent=1 // pred_fallthru
      _
    // Predicated region
    $region38: #{tpu_custom_call.1} parent=1 // pred_check
      _
    $region39: #{tpu_custom_call.1} parent=1 // pred_check_branch
      %77 = sbr.rel (0) target = $region41
    $region40: #{tpu_custom_call.1} parent=1 // pred_region
      %78 = dma.done [#allocation6], 1024
    $region41: #{tpu_custom_call.1} parent=1 // pred_fallthru
      _
    // Predicated region
    $region42: #{tpu_custom_call.1} parent=1 // pred_check
      _
    $region43: #{tpu_custom_call.1} parent=1 // pred_check_branch
      %80 = sbr.rel (0) target = $region45
    $region44: #{tpu_custom_call.1} parent=1 // pred_region
      %81 = dma.done [#allocation9], 1024
    $region45: #{tpu_custom_call.1} parent=1 // pred_fallthru
      _
    %v83 = vld [vmem:[#allocation2] sm:$0xf]
    %v84 = vld [vmem:[#allocation2 + $0x4] sm:$0xf]
    %v85 = vld [vmem:[#allocation2 + $0x8] sm:$0xf]
    %v86 = vld [vmem:[#allocation2 + $0xc] sm:$0xf]
    %v87 = vld [vmem:[#allocation2 + $0x10] sm:$0xf]
    %v88 = vld [vmem:[#allocation2 + $0x14] sm:$0xf]
    %v89 = vld [vmem:[#allocation2 + $0x18] sm:$0xf]
    %v90 = vld [vmem:[#allocation2 + $0x1c] sm:$0xf]
    %v91 = vld [vmem:[#allocation5] sm:$0xf]
    %v92 = vld [vmem:[#allocation5 + $0x4] sm:$0xf]
    %v93 = vld [vmem:[#allocation5 + $0x8] sm:$0xf]
    %v94 = vld [vmem:[#allocation5 + $0xc] sm:$0xf]
    %v95 = vld [vmem:[#allocation5 + $0x10] sm:$0xf]
    %v96 = vld [vmem:[#allocation5 + $0x14] sm:$0xf]
    %v97 = vld [vmem:[#allocation5 + $0x18] sm:$0xf]
    %v98 = vld [vmem:[#allocation5 + $0x1c] sm:$0xf]
    %v99 = vld [vmem:[#allocation5 + $0x20] sm:$0xf]
    %v100 = vld [vmem:[#allocation5 + $0x24] sm:$0xf]
    %v101 = vld [vmem:[#allocation5 + $0x28] sm:$0xf]
    %v102 = vld [vmem:[#allocation5 + $0x2c] sm:$0xf]
    %v103 = vld [vmem:[#allocation5 + $0x30] sm:$0xf]
    %v104 = vld [vmem:[#allocation5 + $0x34] sm:$0xf]
    %v105 = vld [vmem:[#allocation5 + $0x38] sm:$0xf]
    %v106 = vld [vmem:[#allocation5 + $0x3c] sm:$0xf]
    %v107 = vld [vmem:[%s2] sm:$0x1]
    %v109 = vlaneseq
    %v110 = vshrl.u32 %v109, 7
    %v111 = vsub.s32 0, %v110
    %v112 = vrot.slane %v107, %v111
    %v122 = vunpack.c.l.b16 %v83
    %v123 = vunpack.c.l.b16 %v84
    %v124 = vunpack.c.l.b16 %v85
    %v125 = vunpack.c.l.b16 %v86
    %v126 = vunpack.c.l.b16 %v87
    %v127 = vunpack.c.l.b16 %v88
    %v128 = vunpack.c.l.b16 %v89
    %v129 = vunpack.c.l.b16 %v90
    %v130 = vpack.c.b16 %v123, %v122
    %v131 = vpack.c.b16 %v125, %v124
    %v132 = vpack.c.b16 %v127, %v126
    %v133 = vpack.c.b16 %v129, %v128
    %v154 = vunpack.c.l.b16 %v91
    %v155 = vunpack.c.l.b16 %v92
    %v156 = vunpack.c.l.b16 %v93
    %v157 = vunpack.c.l.b16 %v94
    %v158 = vunpack.c.l.b16 %v95
    %v159 = vunpack.c.l.b16 %v96
    %v160 = vunpack.c.l.b16 %v97
    %v161 = vunpack.c.l.b16 %v98
    %v162 = vunpack.c.l.b16 %v99
    %v163 = vunpack.c.l.b16 %v100
    %v164 = vunpack.c.l.b16 %v101
    %v165 = vunpack.c.l.b16 %v102
    %v166 = vunpack.c.l.b16 %v103
    %v167 = vunpack.c.l.b16 %v104
    %v168 = vunpack.c.l.b16 %v105
    %v169 = vunpack.c.l.b16 %v106
    %v170 = vpack.c.b16 %v155, %v154
    %v171 = vpack.c.b16 %v157, %v156
    %v172 = vpack.c.b16 %v159, %v158
    %v173 = vpack.c.b16 %v161, %v160
    %v174 = vpack.c.b16 %v163, %v162
    %v175 = vpack.c.b16 %v165, %v164
    %v176 = vpack.c.b16 %v167, %v166
    %v177 = vpack.c.b16 %v169, %v168
    %186 = vmatprep.subr.bf16.mxu0 0
    %187 = vmatpush1.bf16.msra.mxu0 %v170
    %188 = vmatprep.subr.bf16.mxu0 0
    %189 = vmatpush1.bf16.msra.mxu0 %v171
    %190 = vmatprep.subr.bf16.mxu0 0
    %191 = vmatpush1.bf16.msra.mxu0 %v172
    %192 = vmatprep.subr.bf16.mxu0 0
    %193 = vmatpush1.bf16.msra.mxu0 %v173
    %194 = vmatprep.subr.bf16.mxu0 0
    %195 = vmatpush1.bf16.msra.mxu0 %v174
    %196 = vmatprep.subr.bf16.mxu0 0
    %197 = vmatpush1.bf16.msra.mxu0 %v175
    %198 = vmatprep.subr.bf16.mxu0 0
    %199 = vmatpush1.bf16.msra.mxu0 %v176
    %200 = vmatprep.subr.bf16.mxu0 0
    %201 = vmatpush1.bf16.msra.mxu0 %v177
    %202 = vmatprep.subr.bf16.mxu0 0
    %203 = vmatpush1.bf16.msra.mxu0 0
    %204 = vmatprep.subr.bf16.mxu0 0
    %205 = vmatpush1.bf16.msra.mxu0 0
    %206 = vmatprep.subr.bf16.mxu0 0
    %207 = vmatpush1.bf16.msra.mxu0 0
    %208 = vmatprep.subr.bf16.mxu0 0
    %209 = vmatpush1.bf16.msra.mxu0 0
    %210 = vmatprep.subr.bf16.mxu0 0
    %211 = vmatpush1.bf16.msra.mxu0 0
    %212 = vmatprep.subr.bf16.mxu0 0
    %213 = vmatpush1.bf16.msra.mxu0 0
    %214 = vmatprep.subr.bf16.mxu0 0
    %215 = vmatpush1.bf16.msra.mxu0 0
    %216 = vmatprep.subr.bf16.mxu0 0
    %217 = vmatpush1.bf16.msra.mxu0 0
    %218 = vmatprep.mubr.bf16.mxu0 0
    %219 = vmatmul.mubr.bf16.gmra.mrb[0].mxu0 %v130
    %v220 = vpop.f32.mrb[0].mxu0
    %v221 = vadd.f32 %v112, %v220
    %v222 = vpop.f32.mrb[0].mxu0
    %v223 = vpop.f32.mrb[0].mxu0
    %v224 = vadd.f32 %v112, %v223
    %v225 = vpop.f32.mrb[0].mxu0
    %226 = vmatprep.mubr.bf16.mxu0 0
    %227 = vmatmul.mubr.bf16.gmra.mrb[0].mxu0 %v131
    %v228 = vpop.f32.mrb[0].mxu0
    %v229 = vadd.f32 %v112, %v228
    %v230 = vpop.f32.mrb[0].mxu0
    %v231 = vpop.f32.mrb[0].mxu0
    %v232 = vadd.f32 %v112, %v231
    %v233 = vpop.f32.mrb[0].mxu0
    %234 = vmatprep.mubr.bf16.mxu0 0
    %235 = vmatmul.mubr.bf16.gmra.mrb[0].mxu0 %v132
    %v236 = vpop.f32.mrb[0].mxu0
    %v237 = vadd.f32 %v112, %v236
    %v238 = vpop.f32.mrb[0].mxu0
    %v239 = vpop.f32.mrb[0].mxu0
    %v240 = vadd.f32 %v112, %v239
    %v241 = vpop.f32.mrb[0].mxu0
    %242 = vmatprep.mubr.bf16.mxu0 0
    %243 = vmatmul.mubr.bf16.gmra.mrb[0].mxu0 %v133
    %v244 = vpop.f32.mrb[0].mxu0
    %v245 = vadd.f32 %v112, %v244
    %v246 = vpop.f32.mrb[0].mxu0
    %v247 = vpop.f32.mrb[0].mxu0
    %v248 = vadd.f32 %v112, %v247
    %v249 = vpop.f32.mrb[0].mxu0
    %250 = vdwg.mxu0
    %v251 = vmax.f32 %v221, 0.0
    %v252 = vmax.f32 %v224, 0.0
    %v253 = vmax.f32 %v229, 0.0
    %v254 = vmax.f32 %v232, 0.0
    %v255 = vmax.f32 %v237, 0.0
    %v256 = vmax.f32 %v240, 0.0
    %v257 = vmax.f32 %v245, 0.0
    %v258 = vmax.f32 %v248, 0.0
    %v259 = vpack.c.bf16 %v252, %v251
    %v260 = vpack.c.bf16 %v254, %v253
    %v261 = vpack.c.bf16 %v256, %v255
    %v262 = vpack.c.bf16 %v258, %v257
    %v263 = vld [vmem:[#allocation7] sm:$0xf]
    %v264 = vld [vmem:[#allocation7 + $0x4] sm:$0xf]
    %v265 = vld [vmem:[#allocation7 + $0x8] sm:$0xf]
    %v266 = vld [vmem:[#allocation7 + $0xc] sm:$0xf]
    %v267 = vld [vmem:[#allocation7 + $0x10] sm:$0xf]
    %v268 = vld [vmem:[#allocation7 + $0x14] sm:$0xf]
    %v269 = vld [vmem:[#allocation7 + $0x18] sm:$0xf]
    %v270 = vld [vmem:[#allocation7 + $0x1c] sm:$0xf]
    %v271 = vld [vmem:[#allocation7 + $0x20] sm:$0xf]
    %v272 = vld [vmem:[#allocation7 + $0x24] sm:$0xf]
    %v273 = vld [vmem:[#allocation7 + $0x28] sm:$0xf]
    %v274 = vld [vmem:[#allocation7 + $0x2c] sm:$0xf]
    %v275 = vld [vmem:[#allocation7 + $0x30] sm:$0xf]
    %v276 = vld [vmem:[#allocation7 + $0x34] sm:$0xf]
    %v277 = vld [vmem:[#allocation7 + $0x38] sm:$0xf]
    %v278 = vld [vmem:[#allocation7 + $0x3c] sm:$0xf]
    %v279 = vld [vmem:[%s4] sm:$0x1]
    %v281 = vlaneseq
    %v282 = vshrl.u32 %v281, 7
    %v283 = vsub.s32 0, %v282
    %v284 = vrot.slane %v279, %v283
    %v302 = vunpack.c.l.b16 %v263
    %v303 = vunpack.c.l.b16 %v264
    %v304 = vunpack.c.l.b16 %v265
    %v305 = vunpack.c.l.b16 %v266
    %v306 = vunpack.c.l.b16 %v267
    %v307 = vunpack.c.l.b16 %v268
    %v308 = vunpack.c.l.b16 %v269
    %v309 = vunpack.c.l.b16 %v270
    %v310 = vunpack.c.l.b16 %v271
    %v311 = vunpack.c.l.b16 %v272
    %v312 = vunpack.c.l.b16 %v273
    %v313 = vunpack.c.l.b16 %v274
    %v314 = vunpack.c.l.b16 %v275
    %v315 = vunpack.c.l.b16 %v276
    %v316 = vunpack.c.l.b16 %v277
    %v317 = vunpack.c.l.b16 %v278
    %v318 = vpack.c.b16 %v303, %v302
    %v319 = vpack.c.b16 %v305, %v304
    %v320 = vpack.c.b16 %v307, %v306
    %v321 = vpack.c.b16 %v309, %v308
    %v322 = vpack.c.b16 %v311, %v310
    %v323 = vpack.c.b16 %v313, %v312
    %v324 = vpack.c.b16 %v315, %v314
    %v325 = vpack.c.b16 %v317, %v316
    %334 = vmatprep.subr.bf16.mxu0 0
    %335 = vmatpush1.bf16.msra.mxu0 %v318
    %336 = vmatprep.subr.bf16.mxu0 0
    %337 = vmatpush1.bf16.msra.mxu0 %v319
    %338 = vmatprep.subr.bf16.mxu0 0
    %339 = vmatpush1.bf16.msra.mxu0 %v320
    %340 = vmatprep.subr.bf16.mxu0 0
    %341 = vmatpush1.bf16.msra.mxu0 %v321
    %342 = vmatprep.subr.bf16.mxu0 0
    %343 = vmatpush1.bf16.msra.mxu0 %v322
    %344 = vmatprep.subr.bf16.mxu0 0
    %345 = vmatpush1.bf16.msra.mxu0 %v323
    %346 = vmatprep.subr.bf16.mxu0 0
    %347 = vmatpush1.bf16.msra.mxu0 %v324
    %348 = vmatprep.subr.bf16.mxu0 0
    %349 = vmatpush1.bf16.msra.mxu0 %v325
    %350 = vmatprep.subr.bf16.mxu0 0
    %351 = vmatpush1.bf16.msra.mxu0 0
    %352 = vmatprep.subr.bf16.mxu0 0
    %353 = vmatpush1.bf16.msra.mxu0 0
    %354 = vmatprep.subr.bf16.mxu0 0
    %355 = vmatpush1.bf16.msra.mxu0 0
    %356 = vmatprep.subr.bf16.mxu0 0
    %357 = vmatpush1.bf16.msra.mxu0 0
    %358 = vmatprep.subr.bf16.mxu0 0
    %359 = vmatpush1.bf16.msra.mxu0 0
    %360 = vmatprep.subr.bf16.mxu0 0
    %361 = vmatpush1.bf16.msra.mxu0 0
    %362 = vmatprep.subr.bf16.mxu0 0
    %363 = vmatpush1.bf16.msra.mxu0 0
    %364 = vmatprep.subr.bf16.mxu0 0
    %365 = vmatpush1.bf16.msra.mxu0 0
    %366 = vmatprep.mubr.bf16.mxu0 0
    %367 = vmatmul.mubr.bf16.gmra.mrb[0].mxu0 %v259
    %v368 = vpop.f32.mrb[0].mxu0
    %v369 = vadd.f32 %v284, %v368
    %v370 = vpop.f32.mrb[0].mxu0
    %v371 = vpop.f32.mrb[0].mxu0
    %v372 = vadd.f32 %v284, %v371
    %v373 = vpop.f32.mrb[0].mxu0
    %374 = vmatprep.mubr.bf16.mxu0 0
    %375 = vmatmul.mubr.bf16.gmra.mrb[0].mxu0 %v260
    %v376 = vpop.f32.mrb[0].mxu0
    %v377 = vadd.f32 %v284, %v376
    %v378 = vpop.f32.mrb[0].mxu0
    %v379 = vpop.f32.mrb[0].mxu0
    %v380 = vadd.f32 %v284, %v379
    %v381 = vpop.f32.mrb[0].mxu0
    %382 = vmatprep.mubr.bf16.mxu0 0
    %383 = vmatmul.mubr.bf16.gmra.mrb[0].mxu0 %v261
    %v384 = vpop.f32.mrb[0].mxu0
    %v385 = vadd.f32 %v284, %v384
    %v386 = vpop.f32.mrb[0].mxu0
    %v387 = vpop.f32.mrb[0].mxu0
    %v388 = vadd.f32 %v284, %v387
    %v389 = vpop.f32.mrb[0].mxu0
    %390 = vmatprep.mubr.bf16.mxu0 0
    %391 = vmatmul.mubr.bf16.gmra.mrb[0].mxu0 %v262
    %v392 = vpop.f32.mrb[0].mxu0
    %v393 = vadd.f32 %v284, %v392
    %v394 = vpop.f32.mrb[0].mxu0
    %v395 = vpop.f32.mrb[0].mxu0
    %v396 = vadd.f32 %v284, %v395
    %v397 = vpop.f32.mrb[0].mxu0
    %398 = vdwg.mxu0
    %v399 = vmax.f32 %v369, 0.0
    %v400 = vmax.f32 %v372, 0.0
    %v401 = vmax.f32 %v377, 0.0
    %v402 = vmax.f32 %v380, 0.0
    %v403 = vmax.f32 %v385, 0.0
    %v404 = vmax.f32 %v388, 0.0
    %v405 = vmax.f32 %v393, 0.0
    %v406 = vmax.f32 %v396, 0.0
    %v407 = vpack.c.bf16 %v400, %v399
    %v408 = vpack.c.bf16 %v402, %v401
    %v409 = vpack.c.bf16 %v404, %v403
    %v410 = vpack.c.bf16 %v406, %v405
    %v411 = vld [vmem:[#allocation8] sm:$0xf]
    %v412 = vld [vmem:[#allocation8 + $0x4] sm:$0xf]
    %v413 = vld [vmem:[#allocation8 + $0x8] sm:$0xf]
    %v414 = vld [vmem:[#allocation8 + $0xc] sm:$0xf]
    %v415 = vld [vmem:[#allocation8 + $0x10] sm:$0xf]
    %v416 = vld [vmem:[#allocation8 + $0x14] sm:$0xf]
    %v417 = vld [vmem:[#allocation8 + $0x18] sm:$0xf]
    %v418 = vld [vmem:[#allocation8 + $0x1c] sm:$0xf]
    %v419 = vld [vmem:[#allocation8 + $0x20] sm:$0xf]
    %v420 = vld [vmem:[#allocation8 + $0x24] sm:$0xf]
    %v421 = vld [vmem:[#allocation8 + $0x28] sm:$0xf]
    %v422 = vld [vmem:[#allocation8 + $0x2c] sm:$0xf]
    %v423 = vld [vmem:[#allocation8 + $0x30] sm:$0xf]
    %v424 = vld [vmem:[#allocation8 + $0x34] sm:$0xf]
    %v425 = vld [vmem:[#allocation8 + $0x38] sm:$0xf]
    %v426 = vld [vmem:[#allocation8 + $0x3c] sm:$0xf]
    %v427 = vld [vmem:[%s6] sm:$0x1]
    %v429 = vlaneseq
    %v430 = vshrl.u32 %v429, 7
    %v431 = vsub.s32 0, %v430
    %v432 = vrot.slane %v427, %v431
    %v450 = vunpack.c.l.b16 %v411
    %v451 = vunpack.c.l.b16 %v412
    %v452 = vunpack.c.l.b16 %v413
    %v453 = vunpack.c.l.b16 %v414
    %v454 = vunpack.c.l.b16 %v415
    %v455 = vunpack.c.l.b16 %v416
    %v456 = vunpack.c.l.b16 %v417
    %v457 = vunpack.c.l.b16 %v418
    %v458 = vunpack.c.l.b16 %v419
    %v459 = vunpack.c.l.b16 %v420
    %v460 = vunpack.c.l.b16 %v421
    %v461 = vunpack.c.l.b16 %v422
    %v462 = vunpack.c.l.b16 %v423
    %v463 = vunpack.c.l.b16 %v424
    %v464 = vunpack.c.l.b16 %v425
    %v465 = vunpack.c.l.b16 %v426
    %v466 = vpack.c.b16 %v451, %v450
    %v467 = vpack.c.b16 %v453, %v452
    %v468 = vpack.c.b16 %v455, %v454
    %v469 = vpack.c.b16 %v457, %v456
    %v470 = vpack.c.b16 %v459, %v458
    %v471 = vpack.c.b16 %v461, %v460
    %v472 = vpack.c.b16 %v463, %v462
    %v473 = vpack.c.b16 %v465, %v464
    %482 = vmatprep.subr.bf16.mxu0 0
    %483 = vmatpush1.bf16.msra.mxu0 %v466
    %484 = vmatprep.subr.bf16.mxu0 0
    %485 = vmatpush1.bf16.msra.mxu0 %v467
    %486 = vmatprep.subr.bf16.mxu0 0
    %487 = vmatpush1.bf16.msra.mxu0 %v468
    %488 = vmatprep.subr.bf16.mxu0 0
    %489 = vmatpush1.bf16.msra.mxu0 %v469
    %490 = vmatprep.subr.bf16.mxu0 0
    %491 = vmatpush1.bf16.msra.mxu0 %v470
    %492 = vmatprep.subr.bf16.mxu0 0
    %493 = vmatpush1.bf16.msra.mxu0 %v471
    %494 = vmatprep.subr.bf16.mxu0 0
    %495 = vmatpush1.bf16.msra.mxu0 %v472
    %496 = vmatprep.subr.bf16.mxu0 0
    %497 = vmatpush1.bf16.msra.mxu0 %v473
    %498 = vmatprep.subr.bf16.mxu0 0
    %499 = vmatpush1.bf16.msra.mxu0 0
    %500 = vmatprep.subr.bf16.mxu0 0
    %501 = vmatpush1.bf16.msra.mxu0 0
    %502 = vmatprep.subr.bf16.mxu0 0
    %503 = vmatpush1.bf16.msra.mxu0 0
    %504 = vmatprep.subr.bf16.mxu0 0
    %505 = vmatpush1.bf16.msra.mxu0 0
    %506 = vmatprep.subr.bf16.mxu0 0
    %507 = vmatpush1.bf16.msra.mxu0 0
    %508 = vmatprep.subr.bf16.mxu0 0
    %509 = vmatpush1.bf16.msra.mxu0 0
    %510 = vmatprep.subr.bf16.mxu0 0
    %511 = vmatpush1.bf16.msra.mxu0 0
    %512 = vmatprep.subr.bf16.mxu0 0
    %513 = vmatpush1.bf16.msra.mxu0 0
    %514 = vmatprep.mubr.bf16.mxu0 0
    %515 = vmatmul.mubr.bf16.gmra.mrb[0].mxu0 %v407
    %v516 = vpop.f32.mrb[0].mxu0
    %v517 = vadd.f32 %v432, %v516
    %v518 = vpop.f32.mrb[0].mxu0
    %v519 = vpop.f32.mrb[0].mxu0
    %v520 = vadd.f32 %v432, %v519
    %v521 = vpop.f32.mrb[0].mxu0
    %522 = vmatprep.mubr.bf16.mxu0 0
    %523 = vmatmul.mubr.bf16.gmra.mrb[0].mxu0 %v408
    %v524 = vpop.f32.mrb[0].mxu0
    %v525 = vadd.f32 %v432, %v524
    %v526 = vpop.f32.mrb[0].mxu0
    %v527 = vpop.f32.mrb[0].mxu0
    %v528 = vadd.f32 %v432, %v527
    %v529 = vpop.f32.mrb[0].mxu0
    %530 = vmatprep.mubr.bf16.mxu0 0
    %531 = vmatmul.mubr.bf16.gmra.mrb[0].mxu0 %v409
    %v532 = vpop.f32.mrb[0].mxu0
    %v533 = vadd.f32 %v432, %v532
    %v534 = vpop.f32.mrb[0].mxu0
    %v535 = vpop.f32.mrb[0].mxu0
    %v536 = vadd.f32 %v432, %v535
    %v537 = vpop.f32.mrb[0].mxu0
    %538 = vmatprep.mubr.bf16.mxu0 0
    %539 = vmatmul.mubr.bf16.gmra.mrb[0].mxu0 %v410
    %v540 = vpop.f32.mrb[0].mxu0
    %v541 = vadd.f32 %v432, %v540
    %v542 = vpop.f32.mrb[0].mxu0
    %v543 = vpop.f32.mrb[0].mxu0
    %v544 = vadd.f32 %v432, %v543
    %v545 = vpop.f32.mrb[0].mxu0
    %546 = vdwg.mxu0
    %547 = vmax.xlane.f32.xlu0 %v517
    %v548 = vpop.xlane.xlu0 %547
    %549 = vmax.xlane.f32.xlu0 %v520
    %v550 = vpop.xlane.xlu0 %549
    %551 = vmax.xlane.f32.xlu0 %v525
    %v552 = vpop.xlane.xlu0 %551
    %553 = vmax.xlane.f32.xlu0 %v528
    %v554 = vpop.xlane.xlu0 %553
    %555 = vmax.xlane.f32.xlu0 %v533
    %v556 = vpop.xlane.xlu0 %555
    %557 = vmax.xlane.f32.xlu0 %v536
    %v558 = vpop.xlane.xlu0 %557
    %559 = vmax.xlane.f32.xlu0 %v541
    %v560 = vpop.xlane.xlu0 %559
    %561 = vmax.xlane.f32.xlu0 %v544
    %v562 = vpop.xlane.xlu0 %561
    %v563 = vsub.f32 %v517, %v548
    %v564 = vsub.f32 %v520, %v550
    %v565 = vsub.f32 %v525, %v552
    %v566 = vsub.f32 %v528, %v554
    %v567 = vsub.f32 %v533, %v556
    %v568 = vsub.f32 %v536, %v558
    %v569 = vsub.f32 %v541, %v560
    %v570 = vsub.f32 %v544, %v562
    %v571 = vmul.f32 %v563, 1.442695
    %v572 = vpow.pop %v571
    %v573 = vmul.f32 %v564, 1.442695
    %v574 = vpow.pop %v573
    %v575 = vmul.f32 %v565, 1.442695
    %v576 = vpow.pop %v575
    %v577 = vmul.f32 %v566, 1.442695
    %v578 = vpow.pop %v577
    %v579 = vmul.f32 %v567, 1.442695
    %v580 = vpow.pop %v579
    %v581 = vmul.f32 %v568, 1.442695
    %v582 = vpow.pop %v581
    %v583 = vmul.f32 %v569, 1.442695
    %v584 = vpow.pop %v583
    %v585 = vmul.f32 %v570, 1.442695
    %v586 = vpow.pop %v585
    %587 = vadd.xlane.f32.xlu0 %v572
    %v588 = vpop.xlane.xlu0 %587
    %589 = vadd.xlane.f32.xlu0 %v574
    %v590 = vpop.xlane.xlu0 %589
    %591 = vadd.xlane.f32.xlu0 %v576
    %v592 = vpop.xlane.xlu0 %591
    %593 = vadd.xlane.f32.xlu0 %v578
    %v594 = vpop.xlane.xlu0 %593
    %595 = vadd.xlane.f32.xlu0 %v580
    %v596 = vpop.xlane.xlu0 %595
    %597 = vadd.xlane.f32.xlu0 %v582
    %v598 = vpop.xlane.xlu0 %597
    %599 = vadd.xlane.f32.xlu0 %v584
    %v600 = vpop.xlane.xlu0 %599
    %601 = vadd.xlane.f32.xlu0 %v586
    %v602 = vpop.xlane.xlu0 %601
    %v603 = vlog2.pop %v588
    %v604 = vmul.f32 %v603, 0.6931472
    %v605 = vlog2.pop %v590
    %v606 = vmul.f32 %v605, 0.6931472
    %v607 = vlog2.pop %v592
    %v608 = vmul.f32 %v607, 0.6931472
    %v609 = vlog2.pop %v594
    %v610 = vmul.f32 %v609, 0.6931472
    %v611 = vlog2.pop %v596
    %v612 = vmul.f32 %v611, 0.6931472
    %v613 = vlog2.pop %v598
    %v614 = vmul.f32 %v613, 0.6931472
    %v615 = vlog2.pop %v600
    %v616 = vmul.f32 %v615, 0.6931472
    %v617 = vlog2.pop %v602
    %v618 = vmul.f32 %v617, 0.6931472
    %v619 = vsub.f32 %v563, %v604
    %v620 = vsub.f32 %v564, %v606
    %v621 = vsub.f32 %v565, %v608
    %v622 = vsub.f32 %v566, %v610
    %v623 = vsub.f32 %v567, %v612
    %v624 = vsub.f32 %v568, %v614
    %v625 = vsub.f32 %v569, %v616
    %v626 = vsub.f32 %v570, %v618
    %627 = vst [vmem:[#allocation10] sm:$0xff] %v619
    %628 = vst [vmem:[#allocation10 + $0x8] sm:$0xff] %v620
    %629 = vst [vmem:[#allocation10 + $0x10] sm:$0xff] %v621
    %630 = vst [vmem:[#allocation10 + $0x18] sm:$0xff] %v622
    %631 = vst [vmem:[#allocation10 + $0x20] sm:$0xff] %v623
    %632 = vst [vmem:[#allocation10 + $0x28] sm:$0xff] %v624
    %633 = vst [vmem:[#allocation10 + $0x30] sm:$0xff] %v625
    %634 = vst [vmem:[#allocation10 + $0x38] sm:$0xff] %v626
    // Predicated region
    $region46: #{tpu_custom_call.1} parent=1 // pred_check
      _
    $region47: #{tpu_custom_call.1} parent=1 // pred_check_branch
      %636 = sbr.rel (0) target = $region49
    $region48: #{tpu_custom_call.1} parent=1 // pred_region
      %s638 = ssub.s32 1024, 1024
      %639 = vsyncadd [#allocation4], %s638
      %s640 = sshll.u32 [#allocation10], 4
      %s641 = int_to_ptr.vmem [resolvable:$true] %s640
      %646 = dma.vmem_to_hbm [thread:$0]  %s641, 1024, %s7, [#allocation4], 128, 128, 8
    $region49: #{tpu_custom_call.1} parent=1 // pred_fallthru
      _
    // Predicated region
    $region50: #{tpu_custom_call.1} parent=1 // pred_check
      _
    $region51: #{tpu_custom_call.1} parent=1 // pred_check_branch
      %648 = sbr.rel (0) target = $region53
    $region52: #{tpu_custom_call.1} parent=1 // pred_region
      %649 = dma.done [#allocation4], 1024
    $region53: #{tpu_custom_call.1} parent=1 // pred_fallthru
      _
    %650 = vsyncpa [#allocation3], 1
    %651 = vsyncpa [#allocation6], 1
    %652 = vsyncpa [#allocation9], 1
    %653 = vsyncpa [#allocation4], 1

</llo_original>
